<compile_context>
chip_gen: v6e
topology: v6e:2x2x1
jax: 0.10.0
libtpu: 0.0.40
codegen_flags: <defaults>
</compile_context>

<pallas_src>
import functools

import jax
import jax.numpy as jnp
from jax.experimental import pallas as pl
from jax.experimental.pallas import tpu as pltpu

IN_FEATURES = 784
HIDDEN = 200
OUT_FEATURES = 10

# Lane-aligned padded dims (weights only; x keeps K=784).
HID_PAD = 256     # 2 * 128
OUT_PAD = 128     # 1 * 128


def _round_up(n, m):
    return ((n + m - 1) // m) * m


def _sigmoid(z):
    # tanh form: a single EUP op + cheap VALU mul/add (vs. exp + reciprocal,
    # two serialized EUP ops per element).
    return 0.5 * (jnp.tanh(0.5 * z) + 1.0)


def classifier_kernel(x_ref, w1_ref, b1_ref, w2_ref, b2_ref, o_ref):
    # x:  (TB, 784) bf16    w1: (784, 256) bf16   b1: (1, 256) f32
    # w2: (256, 128) bf16   b2: (1, 128) f32      o:  (TB, 128) bf16
    # Layer 1: bf16 MXU matmul, f32 accumulation, f32 epilogue.
    h = jnp.dot(x_ref[...], w1_ref[...], preferred_element_type=jnp.float32)
    h = _sigmoid(h + b1_ref[...])
    # Layer 2.
    y = jnp.dot(h.astype(jnp.bfloat16), w2_ref[...],
                preferred_element_type=jnp.float32)
    o_ref[...] = _sigmoid(y + b2_ref[...]).astype(o_ref.dtype)


def prepare_params(w1, b1, w2, b2):
    """Pad + cast the weights once, outside the per-call path.

    Zero padding is mathematically inert: padded hidden columns produce
    sigmoid(0)=0.5 but multiply zero rows of w2_p; padded output columns are
    zero + zero-bias and are sliced away by the wrapper.
    """
    w1_p = jnp.pad(w1, ((0, 0), (0, HID_PAD - HIDDEN))).astype(jnp.bfloat16)
    b1_p = jnp.pad(b1, ((0, 0), (0, HID_PAD - HIDDEN))).astype(jnp.float32)
    w2_p = jnp.pad(w2, ((0, HID_PAD - HIDDEN), (0, OUT_PAD - OUT_FEATURES))
                   ).astype(jnp.bfloat16)
    b2_p = jnp.pad(b2, ((0, 0), (0, OUT_PAD - OUT_FEATURES))).astype(jnp.float32)
    return w1_p, b1_p, w2_p, b2_p


def _batch_tile(batch, block_batch):
    # Multiple of 16 sublanes (bf16 packing), capped by block_batch, and small
    # enough that the "parallel" batch axis has >= 2 grid steps whenever the
    # batch allows it, so both TensorCores on v7x get work (no-op on v5e/v6e).
    tb = min(block_batch, _round_up(batch, 16))
    two_way = max(16, _round_up(pl.cdiv(batch, 2), 16))
    return min(tb, two_way)


@functools.partial(jax.jit, static_argnames=("block_batch",))
def classifier_forward(x, w1_p, b1_p, w2_p, b2_p, *, block_batch=2048):
    """x: (B, 784) float; params from prepare_params().

    Returns (B, 10) f32 = sigmoid(sigmoid(x @ w1 + b1) @ w2 + b2).
    """
    B = x.shape[0]
    tb = _batch_tile(B, block_batch)
    b_pad = _round_up(B, tb)
    grid = (b_pad // tb,)

    # Stream x as bf16; only pad the batch dim (rows), never the feature dim.
    x_p = x.astype(jnp.bfloat16)
    if b_pad != B:
        x_p = jnp.pad(x_p, ((0, b_pad - B), (0, 0)))

    out_padded = pl.pallas_call(
        classifier_kernel,
        out_shape=jax.ShapeDtypeStruct((b_pad, OUT_PAD), jnp.bfloat16),
        grid=grid,
        in_specs=[
            # Streamed batch tile of activations (K=784 == full array dim).
            pl.BlockSpec((tb, IN_FEATURES), lambda i: (i, 0)),
            # Weights/biases: constant index_map -> fetched once, VMEM-resident
            # across all grid iterations (~0.5 MiB total).  pl.Buffered(1)
            # would drop the redundant second buffer (~0.5 MiB more headroom);
            # left at the default to keep lowering maximally portable.
            pl.BlockSpec((IN_FEATURES, HID_PAD), lambda i: (0, 0)),
            pl.BlockSpec((1, HID_PAD), lambda i: (0, 0)),
            pl.BlockSpec((HID_PAD, OUT_PAD), lambda i: (0, 0)),
            pl.BlockSpec((1, OUT_PAD), lambda i: (0, 0)),
        ],
        out_specs=pl.BlockSpec((tb, OUT_PAD), lambda i: (i, 0)),
        compiler_params=pltpu.CompilerParams(
            dimension_semantics=("parallel",),
            vmem_limit_bytes=32 * 1024 * 1024,
        ),
    )(x_p, w1_p, b1_p, w2_p, b2_p)

    # Lane-dense bf16 slab from the kernel; tiny slice/cast to the logical
    # (B, 10) f32 result happens here, outside the hot loop.
    return out_padded[:B, :OUT_FEATURES].astype(jnp.float32)


def init_params(key):
    """PyTorch nn.Linear-style init (uniform +/- 1/sqrt(fan_in)); weights (in, out)."""
    k1, k2, k3, k4 = jax.random.split(key, 4)
    bound1 = 1.0 / jnp.sqrt(IN_FEATURES)
    bound2 = 1.0 / jnp.sqrt(HIDDEN)
    w1 = jax.random.uniform(k1, (IN_FEATURES, HIDDEN), jnp.float32, -bound1, bound1)
    b1 = jax.random.uniform(k2, (1, HIDDEN), jnp.float32, -bound1, bound1)
    w2 = jax.random.uniform(k3, (HIDDEN, OUT_FEATURES), jnp.float32, -bound2, bound2)
    b2 = jax.random.uniform(k4, (1, OUT_FEATURES), jnp.float32, -bound2, bound2)
    return w1, b1, w2, b2


def _sigmoid_ref(z):
    return 1.0 / (1.0 + jnp.exp(-z))


# TODO(synk): train()/SGD/MSELoss and plot_progress are training-side utilities
# of the PyTorch module; only the forward pass is implemented here.

if __name__ == "__main__":
    key = jax.random.PRNGKey(0)
    k_params, k_x = jax.random.split(key)

    w1, b1, w2, b2 = init_params(k_params)
    # Hoisted out of the per-call path: pad + bf16-cast the weights once.
    w1_p, b1_p, w2_p, b2_p = prepare_params(w1, b1, w2, b2)

    # Small batch of flattened 28x28 "images".  With B=24 the two-way tile cap
    # gives tb=16 -> grid=(2,), exercising the multi-step / megacore path.
    B = 24
    x = jax.random.uniform(k_x, (B, IN_FEATURES), jnp.float32)

    out = classifier_forward(x, w1_p, b1_p, w2_p, b2_p)
    out = jax.block_until_ready(out)

    # Pure-f32 reference of the same math.  bf16 MXU inputs + bf16 output slab
    # shift results at the ~1e-3 level; tolerance tightened vs. v1 now that the
    # sigmoid uses the exact tanh form.
    ref = _sigmoid_ref(_sigmoid_ref(x @ w1 + b1) @ w2 + b2)
    assert out.shape == (B, OUT_FEATURES)
    assert jnp.allclose(out, ref, atol=5e-3, rtol=0.0), float(
        jnp.max(jnp.abs(out - ref)))

    print("KERNEL_OK")
</pallas_src>

<mosaic_0001>
module attributes {stable_mosaic.version = 11 : i64} {
  func.func @classifier_kernel(%arg0: i32, %arg1: memref<16x784xbf16, #tpu.memory_space<vmem>>, %arg2: memref<784x256xbf16, #tpu.memory_space<vmem>>, %arg3: memref<1x256xf32, #tpu.memory_space<vmem>>, %arg4: memref<256x128xbf16, #tpu.memory_space<vmem>>, %arg5: memref<1x128xf32, #tpu.memory_space<vmem>>, %arg6: memref<16x128xbf16, #tpu.memory_space<vmem>>) attributes {dimension_semantics = [#tpu.dimension_semantics<parallel>], iteration_bounds = array<i64: 2>, scalar_prefetch = 0 : i64, scratch_operands = 0 : i64, tpu.core_type = #tpu.core_type<tc>, window_params = [{transform_indices = @transform_0, window_bounds = array<i64: 16, 784>}, {pipeline_mode = #tpu.pipeline_mode<synchronous>, transform_indices = @transform_1, window_bounds = array<i64: 784, 256>}, {pipeline_mode = #tpu.pipeline_mode<synchronous>, transform_indices = @transform_2, window_bounds = array<i64: 1, 256>}, {pipeline_mode = #tpu.pipeline_mode<synchronous>, transform_indices = @transform_3, window_bounds = array<i64: 256, 128>}, {pipeline_mode = #tpu.pipeline_mode<synchronous>, transform_indices = @transform_4, window_bounds = array<i64: 1, 128>}, {transform_indices = @transform_5, window_bounds = array<i64: 16, 128>}]} {
    %c0 = arith.constant 0 : index
    %c0_0 = arith.constant 0 : index
    %0 = vector.load %arg1[%c0, %c0_0] : memref<16x784xbf16, #tpu.memory_space<vmem>>, vector<16x784xbf16>
    %c0_1 = arith.constant 0 : index
    %c0_2 = arith.constant 0 : index
    %1 = vector.load %arg2[%c0_1, %c0_2] : memref<784x256xbf16, #tpu.memory_space<vmem>>, vector<784x256xbf16>
    %cst = arith.constant dense<0.000000e+00> : vector<16x256xf32>
    %2 = tpu.matmul %0, %1, %cst {dimension_numbers = #tpu.dot_dimension_numbers<[1], [0], [0], [1], [0, 0, 1, 1], [], []>} : vector<16x784xbf16>, vector<784x256xbf16>, vector<16x256xf32> -> vector<16x256xf32>
    %c0_3 = arith.constant 0 : index
    %c0_4 = arith.constant 0 : index
    %3 = vector.load %arg3[%c0_3, %c0_4] : memref<1x256xf32, #tpu.memory_space<vmem>>, vector<1x256xf32>
    %4 = vector.broadcast %3 : vector<1x256xf32> to vector<16x256xf32>
    %5 = arith.addf %2, %4 : vector<16x256xf32>
    %cst_5 = arith.constant 5.000000e-01 : f32
    %6 = vector.broadcast %cst_5 : f32 to vector<16x256xf32>
    %7 = arith.mulf %6, %5 : vector<16x256xf32>
    %8 = math.tanh %7 : vector<16x256xf32>
    %cst_6 = arith.constant 1.000000e+00 : f32
    %9 = vector.broadcast %cst_6 : f32 to vector<16x256xf32>
    %10 = arith.addf %8, %9 : vector<16x256xf32>
    %cst_7 = arith.constant 5.000000e-01 : f32
    %11 = vector.broadcast %cst_7 : f32 to vector<16x256xf32>
    %12 = arith.mulf %11, %10 : vector<16x256xf32>
    %13 = arith.truncf %12 : vector<16x256xf32> to vector<16x256xbf16>
    %c0_8 = arith.constant 0 : index
    %c0_9 = arith.constant 0 : index
    %14 = vector.load %arg4[%c0_8, %c0_9] : memref<256x128xbf16, #tpu.memory_space<vmem>>, vector<256x128xbf16>
    %cst_10 = arith.constant dense<0.000000e+00> : vector<16x128xf32>
    %15 = tpu.matmul %13, %14, %cst_10 {dimension_numbers = #tpu.dot_dimension_numbers<[1], [0], [0], [1], [0, 0, 1, 1], [], []>} : vector<16x256xbf16>, vector<256x128xbf16>, vector<16x128xf32> -> vector<16x128xf32>
    %c0_11 = arith.constant 0 : index
    %c0_12 = arith.constant 0 : index
    %16 = vector.load %arg5[%c0_11, %c0_12] : memref<1x128xf32, #tpu.memory_space<vmem>>, vector<1x128xf32>
    %17 = vector.broadcast %16 : vector<1x128xf32> to vector<16x128xf32>
    %18 = arith.addf %15, %17 : vector<16x128xf32>
    %cst_13 = arith.constant 5.000000e-01 : f32
    %19 = vector.broadcast %cst_13 : f32 to vector<16x128xf32>
    %20 = arith.mulf %19, %18 : vector<16x128xf32>
    %21 = math.tanh %20 : vector<16x128xf32>
    %cst_14 = arith.constant 1.000000e+00 : f32
    %22 = vector.broadcast %cst_14 : f32 to vector<16x128xf32>
    %23 = arith.addf %21, %22 : vector<16x128xf32>
    %cst_15 = arith.constant 5.000000e-01 : f32
    %24 = vector.broadcast %cst_15 : f32 to vector<16x128xf32>
    %25 = arith.mulf %24, %23 : vector<16x128xf32>
    %26 = arith.truncf %25 : vector<16x128xf32> to vector<16x128xbf16>
    %c0_16 = arith.constant 0 : index
    %c0_17 = arith.constant 0 : index
    %27 = vector.load %arg6[%c0_16, %c0_17] : memref<16x128xbf16, #tpu.memory_space<vmem>>, vector<16x128xbf16>
    tpu.vector_store %arg6[%c0_16, %c0_17], %26 {strides = array<i32>} : memref<16x128xbf16, #tpu.memory_space<vmem>>, vector<16x128xbf16>,
    return
  }
  func.func @transform_0(%arg0: i32) -> (i32, i32) {
    %c0_i32 = arith.constant 0 : i32
    %c0_i32_0 = arith.constant 0 : i32
    return %arg0, %c0_i32 : i32, i32
  }
  func.func @transform_1(%arg0: i32) -> (i32, i32) {
    %c0_i32 = arith.constant 0 : i32
    %c0_i32_0 = arith.constant 0 : i32
    %c0_i32_1 = arith.constant 0 : i32
    return %c0_i32, %c0_i32_0 : i32, i32
  }
  func.func @transform_2(%arg0: i32) -> (i32, i32) {
    %c0_i32 = arith.constant 0 : i32
    %c0_i32_0 = arith.constant 0 : i32
    %c0_i32_1 = arith.constant 0 : i32
    return %c0_i32, %c0_i32_0 : i32, i32
  }
  func.func @transform_3(%arg0: i32) -> (i32, i32) {
    %c0_i32 = arith.constant 0 : i32
    %c0_i32_0 = arith.constant 0 : i32
    %c0_i32_1 = arith.constant 0 : i32
    return %c0_i32, %c0_i32_0 : i32, i32
  }
  func.func @transform_4(%arg0: i32) -> (i32, i32) {
    %c0_i32 = arith.constant 0 : i32
    %c0_i32_0 = arith.constant 0 : i32
    %c0_i32_1 = arith.constant 0 : i32
    return %c0_i32, %c0_i32_0 : i32, i32
  }
  func.func @transform_5(%arg0: i32) -> (i32, i32) {
    %c0_i32 = arith.constant 0 : i32
    %c0_i32_0 = arith.constant 0 : i32
    return %arg0, %c0_i32 : i32, i32
  }
}

</mosaic_0001>

<llo_original>
// kernel: classifier_forward.1
$region0: #{classifier_forward.1}
  #allocation0 [shape = 'u32[]', space=smem, size = 0x4, offset = 0x4, fixed_abs, tag = 'smem constant byte address 0x4 - core index']
  #allocation1 [shape = 'u32[144,128]{1,0:T(1,128)}', space=vmem, size = 0x12000, scoped, tag = 'internal scratch']
  %s0 = inlined_call_operand.vmem [shape: bf16[32,784], index: 0, kind: input, shape index: {}]
  %s1 = inlined_call_operand.hbm [shape: bf16[784,256], index: 1, kind: input, shape index: {}]
  %s2 = inlined_call_operand.vmem [shape: f32[1,256], index: 2, kind: input, shape index: {}]
  %s3 = inlined_call_operand.vmem [shape: bf16[256,128], index: 3, kind: input, shape index: {}]
  %s4 = inlined_call_operand.vmem [shape: f32[1,128], index: 4, kind: input, shape index: {}]
  %s5 = inlined_call_operand.vmem [shape: bf16[32,128], index: 5, kind: output, shape index: {}]
  %s6 = sld [smem:[#allocation0]]
  $region57: #{classifier_forward.1} parent=0
    _
  %s8 = ssub.s32 1, %s6
  %s9 = scalar_select 0, %s8, %s6
  $region1: #{classifier_forward.1} parent=0
    #allocation2 [shape = 'u8[401408]{0}', space=vmem, size = 0x62000, scoped, tag = 'input window, operand 1, single buffered']
    #allocation3 [shape = 's32[2]{0}', space=sflag, size = 0x8, scoped, tag = 'scoped memory for classifier_forward.1']
    %10 = vsyncpa [#allocation3], 0
    loop: start=0, step=1, limit=4
    $region2: #{classifier_forward.1} parent=1 // loop_pre_header
      _
    $region3: #{classifier_forward.1} parent=1 // loop_header
      %s12 = sphi 0, %s16
      %p13 = scmp.ge.s32.totalorder %s12, 4
      %s22 = sphi 0, %s24
      %s25 = sphi 0, %s22
      %s26 = sphi 0, %s25
      %s42 = sphi 0, %s26
      %s46 = sphi 0, %s46
      %s48 = sphi 0, %s46
      %s49 = sphi 0, %s48
      %s63 = sphi 0, %s49
      %s67 = sphi 0, %s67
      %s69 = sphi 0, %s67
      %s70 = sphi 0, %s69
      %s84 = sphi 0, %s70
      %s88 = sphi 0, %s88
      %s90 = sphi 0, %s88
      %s91 = sphi 0, %s90
      %s105 = sphi 0, %s91
      %s109 = sphi 0, %s109
      %s111 = sphi 0, %s109
      %s112 = sphi 0, %s111
      %s126 = sphi 0, %s112
      %s132 = sphi 0, %s134
      %s135 = sphi 0, %s132
      %s136 = sphi 0, %s135
      %s152 = sphi 0, %s136
    $region4: #{classifier_forward.1} parent=1 // loop_header_branch
      %15 = sbr.rel (%p13) target = $region8
    $region5: #{classifier_forward.1} parent=1 // loop_body
      %s17 = ssub.s32 %s12, 1
      %s18 = ssub.s32 %s12, 2
      %s19 = sadd.s32 %s12, 1
      %s20 = ssub.s32 %s12, %s19
      %p21 = scmp.eq.s32.totalorder %s20, 0
      %s23 = sadd.s32 %s22, 1
      %s24 = scalar_select %p21, %s22, %s23
      %p27 = pneg %p21
      %p28 = scmp.eq.s32.totalorder %s12, 1
      %p29 = por %p27, %p28
      %p30 = scmp.ne.s32.totalorder %s22, %s25
      %p31 = scmp.eq.s32.totalorder %s12, 0
      %p32 = por %p30, %p31
      %p33 = scmp.ne.s32.totalorder %s22, %s25
      %p34 = scmp.eq.s32.totalorder %s17, 1
      %p35 = por %p33, %p34
      %p36 = scmp.ne.s32.totalorder %s25, %s26
      %p37 = scmp.eq.s32.totalorder %s17, 0
      %p38 = por %p36, %p37
      %p39 = scmp.ne.s32.totalorder %s25, %s26
      %p40 = scmp.eq.s32.totalorder %s18, 1
      %p41 = por %p39, %p40
      %p43 = scmp.ne.s32.totalorder %s26, %s42
      %p44 = scmp.eq.s32.totalorder %s18, 0
      %p45 = por %p43, %p44
      %s47 = sadd.s32 %s46, 1
      %p50 = scmp.eq.s32.totalorder %s12, 1
      %p51 = scmp.ne.s32.totalorder %s46, %s48
      %p52 = scmp.eq.s32.totalorder %s12, 0
      %p53 = por %p51, %p52
      %p54 = scmp.ne.s32.totalorder %s46, %s48
      %p55 = scmp.eq.s32.totalorder %s17, 1
      %p56 = por %p54, %p55
      %p57 = scmp.ne.s32.totalorder %s48, %s49
      %p58 = scmp.eq.s32.totalorder %s17, 0
      %p59 = por %p57, %p58
      %p60 = scmp.ne.s32.totalorder %s48, %s49
      %p61 = scmp.eq.s32.totalorder %s18, 1
      %p62 = por %p60, %p61
      %p64 = scmp.ne.s32.totalorder %s49, %s63
      %p65 = scmp.eq.s32.totalorder %s18, 0
      %p66 = por %p64, %p65
      %s68 = sadd.s32 %s67, 1
      %p71 = scmp.eq.s32.totalorder %s12, 1
      %p72 = scmp.ne.s32.totalorder %s67, %s69
      %p73 = scmp.eq.s32.totalorder %s12, 0
      %p74 = por %p72, %p73
      %p75 = scmp.ne.s32.totalorder %s67, %s69
      %p76 = scmp.eq.s32.totalorder %s17, 1
      %p77 = por %p75, %p76
      %p78 = scmp.ne.s32.totalorder %s69, %s70
      %p79 = scmp.eq.s32.totalorder %s17, 0
      %p80 = por %p78, %p79
      %p81 = scmp.ne.s32.totalorder %s69, %s70
      %p82 = scmp.eq.s32.totalorder %s18, 1
      %p83 = por %p81, %p82
      %p85 = scmp.ne.s32.totalorder %s70, %s84
      %p86 = scmp.eq.s32.totalorder %s18, 0
      %p87 = por %p85, %p86
      %s89 = sadd.s32 %s88, 1
      %p92 = scmp.eq.s32.totalorder %s12, 1
      %p93 = scmp.ne.s32.totalorder %s88, %s90
      %p94 = scmp.eq.s32.totalorder %s12, 0
      %p95 = por %p93, %p94
      %p96 = scmp.ne.s32.totalorder %s88, %s90
      %p97 = scmp.eq.s32.totalorder %s17, 1
      %p98 = por %p96, %p97
      %p99 = scmp.ne.s32.totalorder %s90, %s91
      %p100 = scmp.eq.s32.totalorder %s17, 0
      %p101 = por %p99, %p100
      %p102 = scmp.ne.s32.totalorder %s90, %s91
      %p103 = scmp.eq.s32.totalorder %s18, 1
      %p104 = por %p102, %p103
      %p106 = scmp.ne.s32.totalorder %s91, %s105
      %p107 = scmp.eq.s32.totalorder %s18, 0
      %p108 = por %p106, %p107
      %s110 = sadd.s32 %s109, 1
      %p113 = scmp.eq.s32.totalorder %s12, 1
      %p114 = scmp.ne.s32.totalorder %s109, %s111
      %p115 = scmp.eq.s32.totalorder %s12, 0
      %p116 = por %p114, %p115
      %p117 = scmp.ne.s32.totalorder %s109, %s111
      %p118 = scmp.eq.s32.totalorder %s17, 1
      %p119 = por %p117, %p118
      %p120 = scmp.ne.s32.totalorder %s111, %s112
      %p121 = scmp.eq.s32.totalorder %s17, 0
      %p122 = por %p120, %p121
      %p123 = scmp.ne.s32.totalorder %s111, %s112
      %p124 = scmp.eq.s32.totalorder %s18, 1
      %p125 = por %p123, %p124
      %p127 = scmp.ne.s32.totalorder %s112, %s126
      %p128 = scmp.eq.s32.totalorder %s18, 0
      %p129 = por %p127, %p128
      %s130 = ssub.s32 %s12, %s19
      %p131 = scmp.eq.s32.totalorder %s130, 0
      %s133 = sadd.s32 %s132, 1
      %s134 = scalar_select %p131, %s132, %s133
      %p137 = pneg %p131
      %p138 = scmp.eq.s32.totalorder %s12, 1
      %p139 = por %p137, %p138
      %p140 = scmp.ne.s32.totalorder %s132, %s135
      %p141 = scmp.eq.s32.totalorder %s12, 0
      %p142 = por %p140, %p141
      %p143 = scmp.ne.s32.totalorder %s132, %s135
      %p144 = scmp.eq.s32.totalorder %s17, 1
      %p145 = por %p143, %p144
      %p146 = scmp.ne.s32.totalorder %s135, %s136
      %p147 = scmp.eq.s32.totalorder %s17, 0
      %p148 = por %p146, %p147
      %p149 = scmp.ne.s32.totalorder %s135, %s136
      %p150 = scmp.eq.s32.totalorder %s18, 1
      %p151 = por %p149, %p150
      %p153 = scmp.ne.s32.totalorder %s136, %s152
      %p154 = scmp.eq.s32.totalorder %s18, 0
      %p155 = por %p153, %p154
      %p156 = scmp.le.s32.totalorder 1, %s12
      %p157 = scmp.lt.s32.totalorder %s12, 3
      %p158 = pnand %p156, %p157
      %p159 = pneg %p158
      // Predicated region
      $region9: #{classifier_forward.1} parent=5 // pred_check
        _
      $region10: #{classifier_forward.1} parent=5 // pred_check_branch
        %161 = sbr.rel (%p158) target = $region12
      $region11: #{classifier_forward.1} parent=5 // pred_region
        %s162 = ssub.s32 %s12, 1
        // Predicated region
        $region13: #{classifier_forward.1} parent=11 // pred_check
          %p163 = pneg %p59
        $region14: #{classifier_forward.1} parent=11 // pred_check_branch
          %165 = sbr.rel (%p163) target = $region16
        $region15: #{classifier_forward.1} parent=11 // pred_region
          %s167 = ssub.s32 12544, 12544
          %168 = vsyncadd [#allocation3], %s167
          %s169 = sshll.u32 [#allocation2], 4
          %s170 = int_to_ptr.vmem [resolvable:$true] %s169
          %175 = dma.hbm_to_vmem [thread:$0]  %s1, 12544, %s170, [#allocation3], 128, 128, 8
        $region16: #{classifier_forward.1} parent=11 // pred_fallthru
          _
        // Predicated region
        $region17: #{classifier_forward.1} parent=11 // pred_check
          %p176 = pneg %p80
        $region18: #{classifier_forward.1} parent=11 // pred_check_branch
          %178 = sbr.rel (%p176) target = $region20
        $region19: #{classifier_forward.1} parent=11 // pred_region
          _
        $region20: #{classifier_forward.1} parent=11 // pred_fallthru
          _
        // Predicated region
        $region21: #{classifier_forward.1} parent=11 // pred_check
          %p179 = pneg %p101
        $region22: #{classifier_forward.1} parent=11 // pred_check_branch
          %181 = sbr.rel (%p179) target = $region24
        $region23: #{classifier_forward.1} parent=11 // pred_region
          _
        $region24: #{classifier_forward.1} parent=11 // pred_fallthru
          _
        // Predicated region
        $region25: #{classifier_forward.1} parent=11 // pred_check
          %p182 = pneg %p122
        $region26: #{classifier_forward.1} parent=11 // pred_check_branch
          %184 = sbr.rel (%p182) target = $region28
        $region27: #{classifier_forward.1} parent=11 // pred_region
          _
        $region28: #{classifier_forward.1} parent=11 // pred_fallthru
          _
      $region12: #{classifier_forward.1} parent=5 // pred_fallthru
        _
      %p185 = scmp.lt.s32.totalorder %s12, 2
      // Predicated region
      $region29: #{classifier_forward.1} parent=5 // pred_check
        %p186 = pneg %p185
      $region30: #{classifier_forward.1} parent=5 // pred_check_branch
        %188 = sbr.rel (%p186) target = $region32
      $region31: #{classifier_forward.1} parent=5 // pred_region
        // Predicated region
        $region33: #{classifier_forward.1} parent=31 // pred_check
          %p189 = pneg %p32
        $region34: #{classifier_forward.1} parent=31 // pred_check_branch
          %191 = sbr.rel (%p189) target = $region36
        $region35: #{classifier_forward.1} parent=31 // pred_region
          %s192 = smul.u32 2, %s12
          %p193 = scmp.lt.s32.totalorder %s192, 3
          %s194 = scalar_select %p193, %s192, 3
          %s195 = smul.addr %s194, 7
          %s196 = smul.addr %s195, 4
          %s197 = scalar_lea.vmem %s0, %s196
          %s198 = smul.u32 2, %s12
        $region36: #{classifier_forward.1} parent=31 // pred_fallthru
          _
      $region32: #{classifier_forward.1} parent=5 // pred_fallthru
        _
      %p199 = scmp.le.s32.totalorder 1, %s12
      %p200 = scmp.lt.s32.totalorder %s12, 3
      %p201 = pnand %p199, %p200
      %p202 = pneg %p201
      // Predicated region
      $region37: #{classifier_forward.1} parent=5 // pred_check
        _
      $region38: #{classifier_forward.1} parent=5 // pred_check_branch
        %204 = sbr.rel (%p201) target = $region40
      $region39: #{classifier_forward.1} parent=5 // pred_region
        %s205 = ssub.s32 %s12, 1
        // Predicated region
        $region41: #{classifier_forward.1} parent=39 // pred_check
          %p206 = pneg %p59
        $region42: #{classifier_forward.1} parent=39 // pred_check_branch
          %208 = sbr.rel (%p206) target = $region44
        $region43: #{classifier_forward.1} parent=39 // pred_region
          %209 = dma.done [#allocation3], 12544
        $region44: #{classifier_forward.1} parent=39 // pred_fallthru
          _
        %s210 = smul.u32 2, %s17
        %p211 = scmp.lt.s32.totalorder %s210, 3
        %s212 = scalar_select %p211, %s210, 3
        %s213 = smul.addr %s212, 7
        %s214 = smul.addr %s213, 4
        %s215 = scalar_lea.vmem %s0, %s214
        %p216 = pneg %p38
        %p217 = pneg %p35
        %p218 = pneg %p59
        %p219 = pneg %p56
        %p220 = pneg %p80
        %p221 = pneg %p77
        %p222 = pneg %p101
        %p223 = pneg %p98
        %p224 = pneg %p122
        %p225 = pneg %p119
        %p226 = pneg %p148
        %p227 = pneg %p145
        %s228 = smul.u32 2, %s17
        %p229 = scmp.lt.s32.totalorder %s228, 3
        %s230 = scalar_select %p229, %s228, 3
        %s231 = smul.addr %s230, 4
        %s232 = scalar_lea.vmem %s5, %s231
        %s233 = smul.u32 2, %s17
        %p234 = scmp.lt.s32.totalorder %s233, 3
        %s235 = scalar_select %p234, %s233, 3
        %s236 = smul.addr %s235, 7
        %s237 = smul.addr %s236, 4
        %s238 = scalar_lea.vmem %s0, %s237
        %s239 = smul.u32 2, %s17
        %s240 = smul.u32 2, %s17
        %p241 = scmp.lt.s32.totalorder %s240, 3
        %s242 = scalar_select %p241, %s240, 3
        %s243 = smul.addr %s242, 4
        %s244 = scalar_lea.vmem %s5, %s243
        %s245 = smul.u32 2, %s17
        %v247 = vld [vmem:[%s238] sm:$0xff]
        %v248 = vld [vmem:[%s238 + $0x8] sm:$0xff]
        %v249 = vld [vmem:[%s238 + $0x10] sm:$0xff]
        %v250 = vld [vmem:[%s238 + $0x18] sm:$0xf]
        %v251 = vld [vmem:[%s238 + $0x1c] sm:$0xff]
        %v252 = vld [vmem:[%s238 + $0x24] sm:$0xff]
        %v253 = vld [vmem:[%s238 + $0x2c] sm:$0xff]
        %v254 = vld [vmem:[%s238 + $0x34] sm:$0xf]
        %v255 = vld [vmem:[#allocation2] sm:$0xff]
        %v256 = vld [vmem:[#allocation2 + $0x8] sm:$0xff]
        %v257 = vld [vmem:[#allocation2 + $0x10] sm:$0xff]
        %v258 = vld [vmem:[#allocation2 + $0x18] sm:$0xff]
        %v259 = vld [vmem:[#allocation2 + $0x20] sm:$0xff]
        %v260 = vld [vmem:[#allocation2 + $0x28] sm:$0xff]
        %v261 = vld [vmem:[#allocation2 + $0x30] sm:$0xff]
        %v262 = vld [vmem:[#allocation2 + $0x38] sm:$0xff]
        %v263 = vld [vmem:[#allocation2 + $0x40] sm:$0xff]
        %v264 = vld [vmem:[#allocation2 + $0x48] sm:$0xff]
        %v265 = vld [vmem:[#allocation2 + $0x50] sm:$0xff]
        %v266 = vld [vmem:[#allocation2 + $0x58] sm:$0xff]
        %v267 = vld [vmem:[#allocation2 + $0x60] sm:$0xff]
        %v268 = vld [vmem:[#allocation2 + $0x68] sm:$0xff]
        %v269 = vld [vmem:[#allocation2 + $0x70] sm:$0xff]
        %v270 = vld [vmem:[#allocation2 + $0x78] sm:$0xff]
        %v271 = vld [vmem:[#allocation2 + $0x80] sm:$0xff]
        %v272 = vld [vmem:[#allocation2 + $0x88] sm:$0xff]
        %v273 = vld [vmem:[#allocation2 + $0x90] sm:$0xff]
        %v274 = vld [vmem:[#allocation2 + $0x98] sm:$0xff]
        %v275 = vld [vmem:[#allocation2 + $0xa0] sm:$0xff]
        %v276 = vld [vmem:[#allocation2 + $0xa8] sm:$0xff]
        %v277 = vld [vmem:[#allocation2 + $0xb0] sm:$0xff]
        %v278 = vld [vmem:[#allocation2 + $0xb8] sm:$0xff]
        %v279 = vld [vmem:[#allocation2 + $0xc0] sm:$0xff]
        %v280 = vld [vmem:[#allocation2 + $0xc8] sm:$0xff]
        %v281 = vld [vmem:[#allocation2 + $0xd0] sm:$0xff]
        %v282 = vld [vmem:[#allocation2 + $0xd8] sm:$0xff]
        %v283 = vld [vmem:[#allocation2 + $0xe0] sm:$0xff]
        %v284 = vld [vmem:[#allocation2 + $0xe8] sm:$0xff]
        %v285 = vld [vmem:[#allocation2 + $0xf0] sm:$0xff]
        %v286 = vld [vmem:[#allocation2 + $0xf8] sm:$0xff]
        %v287 = vld [vmem:[#allocation2 + $0x100] sm:$0xff]
        %v288 = vld [vmem:[#allocation2 + $0x108] sm:$0xff]
        %v289 = vld [vmem:[#allocation2 + $0x110] sm:$0xff]
        %v290 = vld [vmem:[#allocation2 + $0x118] sm:$0xff]
        %v291 = vld [vmem:[#allocation2 + $0x120] sm:$0xff]
        %v292 = vld [vmem:[#allocation2 + $0x128] sm:$0xff]
        %v293 = vld [vmem:[#allocation2 + $0x130] sm:$0xff]
        %v294 = vld [vmem:[#allocation2 + $0x138] sm:$0xff]
        %v295 = vld [vmem:[#allocation2 + $0x140] sm:$0xff]
        %v296 = vld [vmem:[#allocation2 + $0x148] sm:$0xff]
        %v297 = vld [vmem:[#allocation2 + $0x150] sm:$0xff]
        %v298 = vld [vmem:[#allocation2 + $0x158] sm:$0xff]
        %v299 = vld [vmem:[#allocation2 + $0x160] sm:$0xff]
        %v300 = vld [vmem:[#allocation2 + $0x168] sm:$0xff]
        %v301 = vld [vmem:[#allocation2 + $0x170] sm:$0xff]
        %v302 = vld [vmem:[#allocation2 + $0x178] sm:$0xff]
        %v303 = vld [vmem:[#allocation2 + $0x180] sm:$0xff]
        %v304 = vld [vmem:[#allocation2 + $0x188] sm:$0xff]
        %v305 = vld [vmem:[#allocation2 + $0x190] sm:$0xff]
        %v306 = vld [vmem:[#allocation2 + $0x198] sm:$0xff]
        %v307 = vld [vmem:[#allocation2 + $0x1a0] sm:$0xff]
        %v308 = vld [vmem:[#allocation2 + $0x1a8] sm:$0xff]
        %v309 = vld [vmem:[#allocation2 + $0x1b0] sm:$0xff]
        %v310 = vld [vmem:[#allocation2 + $0x1b8] sm:$0xff]
        %v311 = vld [vmem:[#allocation2 + $0x1c0] sm:$0xff]
        %v312 = vld [vmem:[#allocation2 + $0x1c8] sm:$0xff]
        %v313 = vld [vmem:[#allocation2 + $0x1d0] sm:$0xff]
        %v314 = vld [vmem:[#allocation2 + $0x1d8] sm:$0xff]
        %v315 = vld [vmem:[#allocation2 + $0x1e0] sm:$0xff]
        %v316 = vld [vmem:[#allocation2 + $0x1e8] sm:$0xff]
        %v317 = vld [vmem:[#allocation2 + $0x1f0] sm:$0xff]
        %v318 = vld [vmem:[#allocation2 + $0x1f8] sm:$0xff]
        %v319 = vld [vmem:[#allocation2 + $0x200] sm:$0xff]
        %v320 = vld [vmem:[#allocation2 + $0x208] sm:$0xff]
        %v321 = vld [vmem:[#allocation2 + $0x210] sm:$0xff]
        %v322 = vld [vmem:[#allocation2 + $0x218] sm:$0xff]
        %v323 = vld [vmem:[#allocation2 + $0x220] sm:$0xff]
        %v324 = vld [vmem:[#allocation2 + $0x228] sm:$0xff]
        %v325 = vld [vmem:[#allocation2 + $0x230] sm:$0xff]
        %v326 = vld [vmem:[#allocation2 + $0x238] sm:$0xff]
        %v327 = vld [vmem:[#allocation2 + $0x240] sm:$0xff]
        %v328 = vld [vmem:[#allocation2 + $0x248] sm:$0xff]
        %v329 = vld [vmem:[#allocation2 + $0x250] sm:$0xff]
        %v330 = vld [vmem:[#allocation2 + $0x258] sm:$0xff]
        %v331 = vld [vmem:[#allocation2 + $0x260] sm:$0xff]
        %v332 = vld [vmem:[#allocation2 + $0x268] sm:$0xff]
        %v333 = vld [vmem:[#allocation2 + $0x270] sm:$0xff]
        %v334 = vld [vmem:[#allocation2 + $0x278] sm:$0xff]
        %v335 = vld [vmem:[#allocation2 + $0x280] sm:$0xff]
        %v336 = vld [vmem:[#allocation2 + $0x288] sm:$0xff]
        %v337 = vld [vmem:[#allocation2 + $0x290] sm:$0xff]
        %v338 = vld [vmem:[#allocation2 + $0x298] sm:$0xff]
        %v339 = vld [vmem:[#allocation2 + $0x2a0] sm:$0xff]
        %v340 = vld [vmem:[#allocation2 + $0x2a8] sm:$0xff]
        %v341 = vld [vmem:[#allocation2 + $0x2b0] sm:$0xff]
        %v342 = vld [vmem:[#allocation2 + $0x2b8] sm:$0xff]
        %v343 = vld [vmem:[#allocation2 + $0x2c0] sm:$0xff]
        %v344 = vld [vmem:[#allocation2 + $0x2c8] sm:$0xff]
        %v345 = vld [vmem:[#allocation2 + $0x2d0] sm:$0xff]
        %v346 = vld [vmem:[#allocation2 + $0x2d8] sm:$0xff]
        %v347 = vld [vmem:[#allocation2 + $0x2e0] sm:$0xff]
        %v348 = vld [vmem:[#allocation2 + $0x2e8] sm:$0xff]
        %v349 = vld [vmem:[#allocation2 + $0x2f0] sm:$0xff]
        %v350 = vld [vmem:[#allocation2 + $0x2f8] sm:$0xff]
        %v351 = vld [vmem:[#allocation2 + $0x300] sm:$0xff]
        %v352 = vld [vmem:[#allocation2 + $0x308] sm:$0xff]
        %v353 = vld [vmem:[%s2] sm:$0x3]
        %v355 = vlaneseq
        %v356 = vshrl.u32 %v355, 7
        %v357 = vsub.s32 0, %v356
        %v358 = vrot.slane %v353, %v357
        %v359 = vlaneseq
        %v360 = vshrl.u32 %v359, 7
        %v361 = vsub.s32 1, %v360
        %v362 = vrot.slane %v353, %v361
        %v373 = vunpack.c.l.b16 %v247
        %v374 = vunpack.c.h.b16 %v247
        %v375 = vunpack.c.l.b16 %v248
        %v376 = vunpack.c.h.b16 %v248
        %v377 = vunpack.c.l.b16 %v249
        %v378 = vunpack.c.h.b16 %v249
        %v379 = vunpack.c.l.b16 %v250
        %v380 = vunpack.c.l.b16 %v251
        %v381 = vunpack.c.h.b16 %v251
        %v382 = vunpack.c.l.b16 %v252
        %v383 = vunpack.c.h.b16 %v252
        %v384 = vunpack.c.l.b16 %v253
        %v385 = vunpack.c.h.b16 %v253
        %v386 = vunpack.c.l.b16 %v254
        %v387 = vpack.c.b16 %v380, %v373
        %v388 = vpack.c.b16 %v381, %v374
        %v389 = vpack.c.b16 %v382, %v375
        %v390 = vpack.c.b16 %v383, %v376
        %v391 = vpack.c.b16 %v384, %v377
        %v392 = vpack.c.b16 %v385, %v378
        %v393 = vpack.c.b16 %v386, %v379
        %v498 = vunpack.c.l.b16 %v255
        %v499 = vunpack.c.h.b16 %v255
        %v500 = vunpack.c.l.b16 %v256
        %v501 = vunpack.c.h.b16 %v256
        %v502 = vunpack.c.l.b16 %v257
        %v503 = vunpack.c.h.b16 %v257
        %v504 = vunpack.c.l.b16 %v258
        %v505 = vunpack.c.h.b16 %v258
        %v506 = vunpack.c.l.b16 %v259
        %v507 = vunpack.c.h.b16 %v259
        %v508 = vunpack.c.l.b16 %v260
        %v509 = vunpack.c.h.b16 %v260
        %v510 = vunpack.c.l.b16 %v261
        %v511 = vunpack.c.h.b16 %v261
        %v512 = vunpack.c.l.b16 %v262
        %v513 = vunpack.c.h.b16 %v262
        %v514 = vunpack.c.l.b16 %v263
        %v515 = vunpack.c.h.b16 %v263
        %v516 = vunpack.c.l.b16 %v264
        %v517 = vunpack.c.h.b16 %v264
        %v518 = vunpack.c.l.b16 %v265
        %v519 = vunpack.c.h.b16 %v265
        %v520 = vunpack.c.l.b16 %v266
        %v521 = vunpack.c.h.b16 %v266
        %v522 = vunpack.c.l.b16 %v267
        %v523 = vunpack.c.h.b16 %v267
        %v524 = vunpack.c.l.b16 %v268
        %v525 = vunpack.c.h.b16 %v268
        %v526 = vunpack.c.l.b16 %v269
        %v527 = vunpack.c.h.b16 %v269
        %v528 = vunpack.c.l.b16 %v270
        %v529 = vunpack.c.h.b16 %v270
        %v530 = vunpack.c.l.b16 %v271
        %v531 = vunpack.c.h.b16 %v271
        %v532 = vunpack.c.l.b16 %v272
        %v533 = vunpack.c.h.b16 %v272
        %v534 = vunpack.c.l.b16 %v273
        %v535 = vunpack.c.h.b16 %v273
        %v536 = vunpack.c.l.b16 %v274
        %v537 = vunpack.c.h.b16 %v274
        %v538 = vunpack.c.l.b16 %v275
        %v539 = vunpack.c.h.b16 %v275
        %v540 = vunpack.c.l.b16 %v276
        %v541 = vunpack.c.h.b16 %v276
        %v542 = vunpack.c.l.b16 %v277
        %v543 = vunpack.c.h.b16 %v277
        %v544 = vunpack.c.l.b16 %v278
        %v545 = vunpack.c.h.b16 %v278
        %v546 = vunpack.c.l.b16 %v279
        %v547 = vunpack.c.h.b16 %v279
        %v548 = vunpack.c.l.b16 %v280
        %v549 = vunpack.c.h.b16 %v280
        %v550 = vunpack.c.l.b16 %v281
        %v551 = vunpack.c.h.b16 %v281
        %v552 = vunpack.c.l.b16 %v282
        %v553 = vunpack.c.h.b16 %v282
        %v554 = vunpack.c.l.b16 %v283
        %v555 = vunpack.c.h.b16 %v283
        %v556 = vunpack.c.l.b16 %v284
        %v557 = vunpack.c.h.b16 %v284
        %v558 = vunpack.c.l.b16 %v285
        %v559 = vunpack.c.h.b16 %v285
        %v560 = vunpack.c.l.b16 %v286
        %v561 = vunpack.c.h.b16 %v286
        %v562 = vunpack.c.l.b16 %v287
        %v563 = vunpack.c.h.b16 %v287
        %v564 = vunpack.c.l.b16 %v288
        %v565 = vunpack.c.h.b16 %v288
        %v566 = vunpack.c.l.b16 %v289
        %v567 = vunpack.c.h.b16 %v289
        %v568 = vunpack.c.l.b16 %v290
        %v569 = vunpack.c.h.b16 %v290
        %v570 = vunpack.c.l.b16 %v291
        %v571 = vunpack.c.h.b16 %v291
        %v572 = vunpack.c.l.b16 %v292
        %v573 = vunpack.c.h.b16 %v292
        %v574 = vunpack.c.l.b16 %v293
        %v575 = vunpack.c.h.b16 %v293
        %v576 = vunpack.c.l.b16 %v294
        %v577 = vunpack.c.h.b16 %v294
        %v578 = vunpack.c.l.b16 %v295
        %v579 = vunpack.c.h.b16 %v295
        %v580 = vunpack.c.l.b16 %v296
        %v581 = vunpack.c.h.b16 %v296
        %v582 = vunpack.c.l.b16 %v297
        %v583 = vunpack.c.h.b16 %v297
        %v584 = vunpack.c.l.b16 %v298
        %v585 = vunpack.c.h.b16 %v298
        %v586 = vunpack.c.l.b16 %v299
        %v587 = vunpack.c.h.b16 %v299
        %v588 = vunpack.c.l.b16 %v300
        %v589 = vunpack.c.h.b16 %v300
        %v590 = vunpack.c.l.b16 %v301
        %v591 = vunpack.c.h.b16 %v301
        %v592 = vunpack.c.l.b16 %v302
        %v593 = vunpack.c.h.b16 %v302
        %v594 = vunpack.c.l.b16 %v303
        %v595 = vunpack.c.h.b16 %v303
        %v596 = vunpack.c.l.b16 %v304
        %v597 = vunpack.c.h.b16 %v304
        %v598 = vunpack.c.l.b16 %v305
        %v599 = vunpack.c.h.b16 %v305
        %v600 = vunpack.c.l.b16 %v306
        %v601 = vunpack.c.h.b16 %v306
        %v602 = vunpack.c.l.b16 %v307
        %v603 = vunpack.c.h.b16 %v307
        %v604 = vunpack.c.l.b16 %v308
        %v605 = vunpack.c.h.b16 %v308
        %v606 = vunpack.c.l.b16 %v309
        %v607 = vunpack.c.h.b16 %v309
        %v608 = vunpack.c.l.b16 %v310
        %v609 = vunpack.c.h.b16 %v310
        %v610 = vunpack.c.l.b16 %v311
        %v611 = vunpack.c.h.b16 %v311
        %v612 = vunpack.c.l.b16 %v312
        %v613 = vunpack.c.h.b16 %v312
        %v614 = vunpack.c.l.b16 %v313
        %v615 = vunpack.c.h.b16 %v313
        %v616 = vunpack.c.l.b16 %v314
        %v617 = vunpack.c.h.b16 %v314
        %v618 = vunpack.c.l.b16 %v315
        %v619 = vunpack.c.h.b16 %v315
        %v620 = vunpack.c.l.b16 %v316
        %v621 = vunpack.c.h.b16 %v316
        %v622 = vunpack.c.l.b16 %v317
        %v623 = vunpack.c.h.b16 %v317
        %v624 = vunpack.c.l.b16 %v318
        %v625 = vunpack.c.h.b16 %v318
        %v626 = vunpack.c.l.b16 %v319
        %v627 = vunpack.c.h.b16 %v319
        %v628 = vunpack.c.l.b16 %v320
        %v629 = vunpack.c.h.b16 %v320
        %v630 = vunpack.c.l.b16 %v321
        %v631 = vunpack.c.h.b16 %v321
        %v632 = vunpack.c.l.b16 %v322
        %v633 = vunpack.c.h.b16 %v322
        %v634 = vunpack.c.l.b16 %v323
        %v635 = vunpack.c.h.b16 %v323
        %v636 = vunpack.c.l.b16 %v324
        %v637 = vunpack.c.h.b16 %v324
        %v638 = vunpack.c.l.b16 %v325
        %v639 = vunpack.c.h.b16 %v325
        %v640 = vunpack.c.l.b16 %v326
        %v641 = vunpack.c.h.b16 %v326
        %v642 = vunpack.c.l.b16 %v327
        %v643 = vunpack.c.h.b16 %v327
        %v644 = vunpack.c.l.b16 %v328
        %v645 = vunpack.c.h.b16 %v328
        %v646 = vunpack.c.l.b16 %v329
        %v647 = vunpack.c.h.b16 %v329
        %v648 = vunpack.c.l.b16 %v330
        %v649 = vunpack.c.h.b16 %v330
        %v650 = vunpack.c.l.b16 %v331
        %v651 = vunpack.c.h.b16 %v331
        %v652 = vunpack.c.l.b16 %v332
        %v653 = vunpack.c.h.b16 %v332
        %v654 = vunpack.c.l.b16 %v333
        %v655 = vunpack.c.h.b16 %v333
        %v656 = vunpack.c.l.b16 %v334
        %v657 = vunpack.c.h.b16 %v334
        %v658 = vunpack.c.l.b16 %v335
        %v659 = vunpack.c.h.b16 %v335
        %v660 = vunpack.c.l.b16 %v336
        %v661 = vunpack.c.h.b16 %v336
        %v662 = vunpack.c.l.b16 %v337
        %v663 = vunpack.c.h.b16 %v337
        %v664 = vunpack.c.l.b16 %v338
        %v665 = vunpack.c.h.b16 %v338
        %v666 = vunpack.c.l.b16 %v339
        %v667 = vunpack.c.h.b16 %v339
        %v668 = vunpack.c.l.b16 %v340
        %v669 = vunpack.c.h.b16 %v340
        %v670 = vunpack.c.l.b16 %v341
        %v671 = vunpack.c.h.b16 %v341
        %v672 = vunpack.c.l.b16 %v342
        %v673 = vunpack.c.h.b16 %v342
        %v674 = vunpack.c.l.b16 %v343
        %v675 = vunpack.c.h.b16 %v343
        %v676 = vunpack.c.l.b16 %v344
        %v677 = vunpack.c.h.b16 %v344
        %v678 = vunpack.c.l.b16 %v345
        %v679 = vunpack.c.h.b16 %v345
        %v680 = vunpack.c.l.b16 %v346
        %v681 = vunpack.c.h.b16 %v346
        %v682 = vunpack.c.l.b16 %v347
        %v683 = vunpack.c.h.b16 %v347
        %v684 = vunpack.c.l.b16 %v348
        %v685 = vunpack.c.h.b16 %v348
        %v686 = vunpack.c.l.b16 %v349
        %v687 = vunpack.c.h.b16 %v349
        %v688 = vunpack.c.l.b16 %v350
        %v689 = vunpack.c.h.b16 %v350
        %v690 = vunpack.c.l.b16 %v351
        %v691 = vunpack.c.h.b16 %v351
        %v692 = vunpack.c.l.b16 %v352
        %v693 = vunpack.c.h.b16 %v352
        %v694 = vpack.c.b16 %v500, %v498
        %v695 = vpack.c.b16 %v501, %v499
        %v696 = vpack.c.b16 %v504, %v502
        %v697 = vpack.c.b16 %v505, %v503
        %v698 = vpack.c.b16 %v508, %v506
        %v699 = vpack.c.b16 %v509, %v507
        %v700 = vpack.c.b16 %v512, %v510
        %v701 = vpack.c.b16 %v513, %v511
        %v702 = vpack.c.b16 %v516, %v514
        %v703 = vpack.c.b16 %v517, %v515
        %v704 = vpack.c.b16 %v520, %v518
        %v705 = vpack.c.b16 %v521, %v519
        %v706 = vpack.c.b16 %v524, %v522
        %v707 = vpack.c.b16 %v525, %v523
        %v708 = vpack.c.b16 %v528, %v526
        %v709 = vpack.c.b16 %v529, %v527
        %v710 = vpack.c.b16 %v532, %v530
        %v711 = vpack.c.b16 %v533, %v531
        %v712 = vpack.c.b16 %v536, %v534
        %v713 = vpack.c.b16 %v537, %v535
        %v714 = vpack.c.b16 %v540, %v538
        %v715 = vpack.c.b16 %v541, %v539
        %v716 = vpack.c.b16 %v544, %v542
        %v717 = vpack.c.b16 %v545, %v543
        %v718 = vpack.c.b16 %v548, %v546
        %v719 = vpack.c.b16 %v549, %v547
        %v720 = vpack.c.b16 %v552, %v550
        %v721 = vpack.c.b16 %v553, %v551
        %v722 = vpack.c.b16 %v556, %v554
        %v723 = vpack.c.b16 %v557, %v555
        %v724 = vpack.c.b16 %v560, %v558
        %v725 = vpack.c.b16 %v561, %v559
        %v726 = vpack.c.b16 %v564, %v562
        %v727 = vpack.c.b16 %v565, %v563
        %v728 = vpack.c.b16 %v568, %v566
        %v729 = vpack.c.b16 %v569, %v567
        %v730 = vpack.c.b16 %v572, %v570
        %v731 = vpack.c.b16 %v573, %v571
        %v732 = vpack.c.b16 %v576, %v574
        %v733 = vpack.c.b16 %v577, %v575
        %v734 = vpack.c.b16 %v580, %v578
        %v735 = vpack.c.b16 %v581, %v579
        %v736 = vpack.c.b16 %v584, %v582
        %v737 = vpack.c.b16 %v585, %v583
        %v738 = vpack.c.b16 %v588, %v586
        %v739 = vpack.c.b16 %v589, %v587
        %v740 = vpack.c.b16 %v592, %v590
        %v741 = vpack.c.b16 %v593, %v591
        %v742 = vpack.c.b16 %v596, %v594
        %v743 = vpack.c.b16 %v597, %v595
        %v744 = vpack.c.b16 %v600, %v598
        %v745 = vpack.c.b16 %v601, %v599
        %v746 = vpack.c.b16 %v604, %v602
        %v747 = vpack.c.b16 %v605, %v603
        %v748 = vpack.c.b16 %v608, %v606
        %v749 = vpack.c.b16 %v609, %v607
        %v750 = vpack.c.b16 %v612, %v610
        %v751 = vpack.c.b16 %v613, %v611
        %v752 = vpack.c.b16 %v616, %v614
        %v753 = vpack.c.b16 %v617, %v615
        %v754 = vpack.c.b16 %v620, %v618
        %v755 = vpack.c.b16 %v621, %v619
        %v756 = vpack.c.b16 %v624, %v622
        %v757 = vpack.c.b16 %v625, %v623
        %v758 = vpack.c.b16 %v628, %v626
        %v759 = vpack.c.b16 %v629, %v627
        %v760 = vpack.c.b16 %v632, %v630
        %v761 = vpack.c.b16 %v633, %v631
        %v762 = vpack.c.b16 %v636, %v634
        %v763 = vpack.c.b16 %v637, %v635
        %v764 = vpack.c.b16 %v640, %v638
        %v765 = vpack.c.b16 %v641, %v639
        %v766 = vpack.c.b16 %v644, %v642
        %v767 = vpack.c.b16 %v645, %v643
        %v768 = vpack.c.b16 %v648, %v646
        %v769 = vpack.c.b16 %v649, %v647
        %v770 = vpack.c.b16 %v652, %v650
        %v771 = vpack.c.b16 %v653, %v651
        %v772 = vpack.c.b16 %v656, %v654
        %v773 = vpack.c.b16 %v657, %v655
        %v774 = vpack.c.b16 %v660, %v658
        %v775 = vpack.c.b16 %v661, %v659
        %v776 = vpack.c.b16 %v664, %v662
        %v777 = vpack.c.b16 %v665, %v663
        %v778 = vpack.c.b16 %v668, %v666
        %v779 = vpack.c.b16 %v669, %v667
        %v780 = vpack.c.b16 %v672, %v670
        %v781 = vpack.c.b16 %v673, %v671
        %v782 = vpack.c.b16 %v676, %v674
        %v783 = vpack.c.b16 %v677, %v675
        %v784 = vpack.c.b16 %v680, %v678
        %v785 = vpack.c.b16 %v681, %v679
        %v786 = vpack.c.b16 %v684, %v682
        %v787 = vpack.c.b16 %v685, %v683
        %v788 = vpack.c.b16 %v688, %v686
        %v789 = vpack.c.b16 %v689, %v687
        %v790 = vpack.c.b16 %v692, %v690
        %v791 = vpack.c.b16 %v693, %v691
        %vm890 = vcmask 130048
        %v892 = vsel %vm890, %v393, 0
        %894 = vmatprep.subr.bf16.mxu0 %v709
        %895 = vmatpush1.bf16.msra.mxu0 %v708
        %896 = vmatprep.subr.bf16.mxu0 %v707
        %897 = vmatpush1.bf16.msra.mxu0 %v706
        %898 = vmatprep.subr.bf16.mxu0 %v705
        %899 = vmatpush1.bf16.msra.mxu0 %v704
        %900 = vmatprep.subr.bf16.mxu0 %v703
        %901 = vmatpush1.bf16.msra.mxu0 %v702
        %902 = vmatprep.subr.bf16.mxu0 %v701
        %903 = vmatpush1.bf16.msra.mxu0 %v700
        %904 = vmatprep.subr.bf16.mxu0 %v699
        %905 = vmatpush1.bf16.msra.mxu0 %v698
        %906 = vmatprep.subr.bf16.mxu0 %v697
        %907 = vmatpush1.bf16.msra.mxu0 %v696
        %908 = vmatprep.subr.bf16.mxu0 %v695
        %909 = vmatpush1.bf16.msra.mxu0 %v694
        %910 = vmatprep.subr.bf16.mxu0 %v725
        %911 = vmatpush2.bf16.msra.mxu0 %v724
        %912 = vmatprep.subr.bf16.mxu0 %v723
        %913 = vmatpush2.bf16.msra.mxu0 %v722
        %914 = vmatprep.subr.bf16.mxu0 %v721
        %915 = vmatpush2.bf16.msra.mxu0 %v720
        %916 = vmatprep.subr.bf16.mxu0 %v719
        %917 = vmatpush2.bf16.msra.mxu0 %v718
        %918 = vmatprep.subr.bf16.mxu0 %v717
        %919 = vmatpush2.bf16.msra.mxu0 %v716
        %920 = vmatprep.subr.bf16.mxu0 %v715
        %921 = vmatpush2.bf16.msra.mxu0 %v714
        %922 = vmatprep.subr.bf16.mxu0 %v713
        %923 = vmatpush2.bf16.msra.mxu0 %v712
        %924 = vmatprep.subr.bf16.mxu0 %v711
        %925 = vmatpush2.bf16.msra.mxu0 %v710
        %926 = vmatprep.mubr.bf16.mxu0 %v388
        %927 = vmatmul.mubr.bf16.gmra.mxu0 %v387
        %v928 = vpop.f32.mrf.mxu0
        %v929 = vadd.f32 %v358, %v928
        %v930 = vpop.f32.mrf.mxu0
        %v931 = vadd.f32 %v362, %v930
        %v932 = vpop.f32.mrf.mxu0
        %v933 = vadd.f32 %v358, %v932
        %v934 = vpop.f32.mrf.mxu0
        %v935 = vadd.f32 %v362, %v934
        %936 = vdwg.mxu0
        %937 = vmatprep.subr.bf16.mxu0 %v741
        %938 = vmatpush1.bf16.msra.mxu0 %v740
        %939 = vmatprep.subr.bf16.mxu0 %v739
        %940 = vmatpush1.bf16.msra.mxu0 %v738
        %941 = vmatprep.subr.bf16.mxu0 %v737
        %942 = vmatpush1.bf16.msra.mxu0 %v736
        %943 = vmatprep.subr.bf16.mxu0 %v735
        %944 = vmatpush1.bf16.msra.mxu0 %v734
        %945 = vmatprep.subr.bf16.mxu0 %v733
        %946 = vmatpush1.bf16.msra.mxu0 %v732
        %947 = vmatprep.subr.bf16.mxu0 %v731
        %948 = vmatpush1.bf16.msra.mxu0 %v730
        %949 = vmatprep.subr.bf16.mxu0 %v729
        %950 = vmatpush1.bf16.msra.mxu0 %v728
        %951 = vmatprep.subr.bf16.mxu0 %v727
        %952 = vmatpush1.bf16.msra.mxu0 %v726
        %953 = vmatprep.subr.bf16.mxu0 %v757
        %954 = vmatpush2.bf16.msra.mxu0 %v756
        %955 = vmatprep.subr.bf16.mxu0 %v755
        %956 = vmatpush2.bf16.msra.mxu0 %v754
        %957 = vmatprep.subr.bf16.mxu0 %v753
        %958 = vmatpush2.bf16.msra.mxu0 %v752
        %959 = vmatprep.subr.bf16.mxu0 %v751
        %960 = vmatpush2.bf16.msra.mxu0 %v750
        %961 = vmatprep.subr.bf16.mxu0 %v749
        %962 = vmatpush2.bf16.msra.mxu0 %v748
        %963 = vmatprep.subr.bf16.mxu0 %v747
        %964 = vmatpush2.bf16.msra.mxu0 %v746
        %965 = vmatprep.subr.bf16.mxu0 %v745
        %966 = vmatpush2.bf16.msra.mxu0 %v744
        %967 = vmatprep.subr.bf16.mxu0 %v743
        %968 = vmatpush2.bf16.msra.mxu0 %v742
        %969 = vmatprep.mubr.bf16.mxu0 %v390
        %970 = vmatmul.mubr.bf16.gmra.mxu0 %v389
        %v971 = vpop.f32.mrf.mxu0
        %v972 = vadd.f32 %v929, %v971
        %v973 = vpop.f32.mrf.mxu0
        %v974 = vadd.f32 %v931, %v973
        %v975 = vpop.f32.mrf.mxu0
        %v976 = vadd.f32 %v933, %v975
        %v977 = vpop.f32.mrf.mxu0
        %v978 = vadd.f32 %v935, %v977
        %979 = vdwg.mxu0
        %980 = vmatprep.subr.bf16.mxu0 %v773
        %981 = vmatpush1.bf16.msra.mxu0 %v772
        %982 = vmatprep.subr.bf16.mxu0 %v771
        %983 = vmatpush1.bf16.msra.mxu0 %v770
        %984 = vmatprep.subr.bf16.mxu0 %v769
        %985 = vmatpush1.bf16.msra.mxu0 %v768
        %986 = vmatprep.subr.bf16.mxu0 %v767
        %987 = vmatpush1.bf16.msra.mxu0 %v766
        %988 = vmatprep.subr.bf16.mxu0 %v765
        %989 = vmatpush1.bf16.msra.mxu0 %v764
        %990 = vmatprep.subr.bf16.mxu0 %v763
        %991 = vmatpush1.bf16.msra.mxu0 %v762
        %992 = vmatprep.subr.bf16.mxu0 %v761
        %993 = vmatpush1.bf16.msra.mxu0 %v760
        %994 = vmatprep.subr.bf16.mxu0 %v759
        %995 = vmatpush1.bf16.msra.mxu0 %v758
        %996 = vmatprep.subr.bf16.mxu0 %v789
        %997 = vmatpush2.bf16.msra.mxu0 %v788
        %998 = vmatprep.subr.bf16.mxu0 %v787
        %999 = vmatpush2.bf16.msra.mxu0 %v786
        %1000 = vmatprep.subr.bf16.mxu0 %v785
        %1001 = vmatpush2.bf16.msra.mxu0 %v784
        %1002 = vmatprep.subr.bf16.mxu0 %v783
        %1003 = vmatpush2.bf16.msra.mxu0 %v782
        %1004 = vmatprep.subr.bf16.mxu0 %v781
        %1005 = vmatpush2.bf16.msra.mxu0 %v780
        %1006 = vmatprep.subr.bf16.mxu0 %v779
        %1007 = vmatpush2.bf16.msra.mxu0 %v778
        %1008 = vmatprep.subr.bf16.mxu0 %v777
        %1009 = vmatpush2.bf16.msra.mxu0 %v776
        %1010 = vmatprep.subr.bf16.mxu0 %v775
        %1011 = vmatpush2.bf16.msra.mxu0 %v774
        %1012 = vmatprep.mubr.bf16.mxu0 %v392
        %1013 = vmatmul.mubr.bf16.gmra.mxu0 %v391
        %v1014 = vpop.f32.mrf.mxu0
        %v1015 = vadd.f32 %v972, %v1014
        %v1016 = vpop.f32.mrf.mxu0
        %v1017 = vadd.f32 %v974, %v1016
        %v1018 = vpop.f32.mrf.mxu0
        %v1019 = vadd.f32 %v976, %v1018
        %v1020 = vpop.f32.mrf.mxu0
        %v1021 = vadd.f32 %v978, %v1020
        %1022 = vdwg.mxu0
        %1023 = vmatprep.subr.bf16.mxu0 0
        %1024 = vmatpush1.bf16.msra.mxu0 0
        %1025 = vmatprep.subr.bf16.mxu0 0
        %1026 = vmatpush1.bf16.msra.mxu0 0
        %1027 = vmatprep.subr.bf16.mxu0 0
        %1028 = vmatpush1.bf16.msra.mxu0 0
        %1029 = vmatprep.subr.bf16.mxu0 0
        %1030 = vmatpush1.bf16.msra.mxu0 0
        %1031 = vmatprep.subr.bf16.mxu0 0
        %1032 = vmatpush1.bf16.msra.mxu0 0
        %1033 = vmatprep.subr.bf16.mxu0 0
        %1034 = vmatpush1.bf16.msra.mxu0 0
        %1035 = vmatprep.subr.bf16.mxu0 0
        %1036 = vmatpush1.bf16.msra.mxu0 0
        %1037 = vmatprep.subr.bf16.mxu0 %v791
        %1038 = vmatpush1.bf16.msra.mxu0 %v790
        %1039 = vmatprep.subr.bf16.mxu0 0
        %1040 = vmatpush2.bf16.msra.mxu0 0
        %1041 = vmatprep.subr.bf16.mxu0 0
        %1042 = vmatpush2.bf16.msra.mxu0 0
        %1043 = vmatprep.subr.bf16.mxu0 0
        %1044 = vmatpush2.bf16.msra.mxu0 0
        %1045 = vmatprep.subr.bf16.mxu0 0
        %1046 = vmatpush2.bf16.msra.mxu0 0
        %1047 = vmatprep.subr.bf16.mxu0 0
        %1048 = vmatpush2.bf16.msra.mxu0 0
        %1049 = vmatprep.subr.bf16.mxu0 0
        %1050 = vmatpush2.bf16.msra.mxu0 0
        %1051 = vmatprep.subr.bf16.mxu0 0
        %1052 = vmatpush2.bf16.msra.mxu0 0
        %1053 = vmatprep.subr.bf16.mxu0 0
        %1054 = vmatpush2.bf16.msra.mxu0 0
        %1055 = vmatprep.mubr.bf16.mxu0 0
        %1056 = vmatmul.mubr.bf16.gmra.mxu0 %v892
        %v1057 = vpop.f32.mrf.mxu0
        %v1058 = vadd.f32 %v1015, %v1057
        %v1059 = vpop.f32.mrf.mxu0
        %v1060 = vadd.f32 %v1017, %v1059
        %v1061 = vpop.f32.mrf.mxu0
        %v1062 = vadd.f32 %v1019, %v1061
        %v1063 = vpop.f32.mrf.mxu0
        %v1064 = vadd.f32 %v1021, %v1063
        %1065 = vdwg.mxu0
        %v1066 = vmul.f32 %v1058, 0.5
        %v1067 = vmul.f32 %v1060, 0.5
        %v1068 = vmul.f32 %v1062, 0.5
        %v1069 = vmul.f32 %v1064, 0.5
        %v1070 = vtanh.pop %v1066
        %v1071 = vtanh.pop %v1067
        %v1072 = vtanh.pop %v1068
        %v1073 = vtanh.pop %v1069
        %v1074 = vadd.f32 %v1070, 1.0
        %v1075 = vadd.f32 %v1071, 1.0
        %v1076 = vadd.f32 %v1072, 1.0
        %v1077 = vadd.f32 %v1073, 1.0
        %v1078 = vmul.f32 %v1074, 0.5
        %v1079 = vmul.f32 %v1075, 0.5
        %v1080 = vmul.f32 %v1076, 0.5
        %v1081 = vmul.f32 %v1077, 0.5
        %v1082 = vpack.c.bf16 %v1080, %v1078
        %v1083 = vpack.c.bf16 %v1081, %v1079
        %v1084 = vld [vmem:[%s3] sm:$0xf]
        %v1085 = vld [vmem:[%s3 + $0x4] sm:$0xf]
        %v1086 = vld [vmem:[%s3 + $0x8] sm:$0xf]
        %v1087 = vld [vmem:[%s3 + $0xc] sm:$0xf]
        %v1088 = vld [vmem:[%s3 + $0x10] sm:$0xf]
        %v1089 = vld [vmem:[%s3 + $0x14] sm:$0xf]
        %v1090 = vld [vmem:[%s3 + $0x18] sm:$0xf]
        %v1091 = vld [vmem:[%s3 + $0x1c] sm:$0xf]
        %v1092 = vld [vmem:[%s3 + $0x20] sm:$0xf]
        %v1093 = vld [vmem:[%s3 + $0x24] sm:$0xf]
        %v1094 = vld [vmem:[%s3 + $0x28] sm:$0xf]
        %v1095 = vld [vmem:[%s3 + $0x2c] sm:$0xf]
        %v1096 = vld [vmem:[%s3 + $0x30] sm:$0xf]
        %v1097 = vld [vmem:[%s3 + $0x34] sm:$0xf]
        %v1098 = vld [vmem:[%s3 + $0x38] sm:$0xf]
        %v1099 = vld [vmem:[%s3 + $0x3c] sm:$0xf]
        %v1100 = vld [vmem:[%s3 + $0x40] sm:$0xf]
        %v1101 = vld [vmem:[%s3 + $0x44] sm:$0xf]
        %v1102 = vld [vmem:[%s3 + $0x48] sm:$0xf]
        %v1103 = vld [vmem:[%s3 + $0x4c] sm:$0xf]
        %v1104 = vld [vmem:[%s3 + $0x50] sm:$0xf]
        %v1105 = vld [vmem:[%s3 + $0x54] sm:$0xf]
        %v1106 = vld [vmem:[%s3 + $0x58] sm:$0xf]
        %v1107 = vld [vmem:[%s3 + $0x5c] sm:$0xf]
        %v1108 = vld [vmem:[%s3 + $0x60] sm:$0xf]
        %v1109 = vld [vmem:[%s3 + $0x64] sm:$0xf]
        %v1110 = vld [vmem:[%s3 + $0x68] sm:$0xf]
        %v1111 = vld [vmem:[%s3 + $0x6c] sm:$0xf]
        %v1112 = vld [vmem:[%s3 + $0x70] sm:$0xf]
        %v1113 = vld [vmem:[%s3 + $0x74] sm:$0xf]
        %v1114 = vld [vmem:[%s3 + $0x78] sm:$0xf]
        %v1115 = vld [vmem:[%s3 + $0x7c] sm:$0xf]
        %v1116 = vld [vmem:[%s4] sm:$0x1]
        %v1118 = vlaneseq
        %v1119 = vshrl.u32 %v1118, 7
        %v1120 = vsub.s32 0, %v1119
        %v1121 = vrot.slane %v1116, %v1120
        %v1155 = vunpack.c.l.b16 %v1084
        %v1156 = vunpack.c.l.b16 %v1085
        %v1157 = vunpack.c.l.b16 %v1086
        %v1158 = vunpack.c.l.b16 %v1087
        %v1159 = vunpack.c.l.b16 %v1088
        %v1160 = vunpack.c.l.b16 %v1089
        %v1161 = vunpack.c.l.b16 %v1090
        %v1162 = vunpack.c.l.b16 %v1091
        %v1163 = vunpack.c.l.b16 %v1092
        %v1164 = vunpack.c.l.b16 %v1093
        %v1165 = vunpack.c.l.b16 %v1094
        %v1166 = vunpack.c.l.b16 %v1095
        %v1167 = vunpack.c.l.b16 %v1096
        %v1168 = vunpack.c.l.b16 %v1097
        %v1169 = vunpack.c.l.b16 %v1098
        %v1170 = vunpack.c.l.b16 %v1099
        %v1171 = vunpack.c.l.b16 %v1100
        %v1172 = vunpack.c.l.b16 %v1101
        %v1173 = vunpack.c.l.b16 %v1102
        %v1174 = vunpack.c.l.b16 %v1103
        %v1175 = vunpack.c.l.b16 %v1104
        %v1176 = vunpack.c.l.b16 %v1105
        %v1177 = vunpack.c.l.b16 %v1106
        %v1178 = vunpack.c.l.b16 %v1107
        %v1179 = vunpack.c.l.b16 %v1108
        %v1180 = vunpack.c.l.b16 %v1109
        %v1181 = vunpack.c.l.b16 %v1110
        %v1182 = vunpack.c.l.b16 %v1111
        %v1183 = vunpack.c.l.b16 %v1112
        %v1184 = vunpack.c.l.b16 %v1113
        %v1185 = vunpack.c.l.b16 %v1114
        %v1186 = vunpack.c.l.b16 %v1115
        %v1187 = vpack.c.b16 %v1156, %v1155
        %v1188 = vpack.c.b16 %v1158, %v1157
        %v1189 = vpack.c.b16 %v1160, %v1159
        %v1190 = vpack.c.b16 %v1162, %v1161
        %v1191 = vpack.c.b16 %v1164, %v1163
        %v1192 = vpack.c.b16 %v1166, %v1165
        %v1193 = vpack.c.b16 %v1168, %v1167
        %v1194 = vpack.c.b16 %v1170, %v1169
        %v1195 = vpack.c.b16 %v1172, %v1171
        %v1196 = vpack.c.b16 %v1174, %v1173
        %v1197 = vpack.c.b16 %v1176, %v1175
        %v1198 = vpack.c.b16 %v1178, %v1177
        %v1199 = vpack.c.b16 %v1180, %v1179
        %v1200 = vpack.c.b16 %v1182, %v1181
        %v1201 = vpack.c.b16 %v1184, %v1183
        %v1202 = vpack.c.b16 %v1186, %v1185
        %1219 = vmatprep.subr.bf16.mxu0 0
        %1220 = vmatpush1.bf16.msra.mxu0 %v1194
        %1221 = vmatprep.subr.bf16.mxu0 0
        %1222 = vmatpush1.bf16.msra.mxu0 %v1193
        %1223 = vmatprep.subr.bf16.mxu0 0
        %1224 = vmatpush1.bf16.msra.mxu0 %v1192
        %1225 = vmatprep.subr.bf16.mxu0 0
        %1226 = vmatpush1.bf16.msra.mxu0 %v1191
        %1227 = vmatprep.subr.bf16.mxu0 0
        %1228 = vmatpush1.bf16.msra.mxu0 %v1190
        %1229 = vmatprep.subr.bf16.mxu0 0
        %1230 = vmatpush1.bf16.msra.mxu0 %v1189
        %1231 = vmatprep.subr.bf16.mxu0 0
        %1232 = vmatpush1.bf16.msra.mxu0 %v1188
        %1233 = vmatprep.subr.bf16.mxu0 0
        %1234 = vmatpush1.bf16.msra.mxu0 %v1187
        %1235 = vmatprep.subr.bf16.mxu0 0
        %1236 = vmatpush2.bf16.msra.mxu0 %v1202
        %1237 = vmatprep.subr.bf16.mxu0 0
        %1238 = vmatpush2.bf16.msra.mxu0 %v1201
        %1239 = vmatprep.subr.bf16.mxu0 0
        %1240 = vmatpush2.bf16.msra.mxu0 %v1200
        %1241 = vmatprep.subr.bf16.mxu0 0
        %1242 = vmatpush2.bf16.msra.mxu0 %v1199
        %1243 = vmatprep.subr.bf16.mxu0 0
        %1244 = vmatpush2.bf16.msra.mxu0 %v1198
        %1245 = vmatprep.subr.bf16.mxu0 0
        %1246 = vmatpush2.bf16.msra.mxu0 %v1197
        %1247 = vmatprep.subr.bf16.mxu0 0
        %1248 = vmatpush2.bf16.msra.mxu0 %v1196
        %1249 = vmatprep.subr.bf16.mxu0 0
        %1250 = vmatpush2.bf16.msra.mxu0 %v1195
        %1251 = vmatprep.mubr.bf16.mxu0 %v1083
        %1252 = vmatmul.mubr.bf16.gmra.mxu0 %v1082
        %v1253 = vpop.f32.mrf.mxu0
        %v1254 = vadd.f32 %v1121, %v1253
        %v1255 = vpop.f32.mrf.mxu0
        %v1256 = vpop.f32.mrf.mxu0
        %v1257 = vadd.f32 %v1121, %v1256
        %v1258 = vpop.f32.mrf.mxu0
        %1259 = vdwg.mxu0
        %v1260 = vmul.f32 %v1254, 0.5
        %v1261 = vmul.f32 %v1257, 0.5
        %v1262 = vtanh.pop %v1260
        %v1263 = vtanh.pop %v1261
        %v1264 = vadd.f32 %v1262, 1.0
        %v1265 = vadd.f32 %v1263, 1.0
        %v1266 = vmul.f32 %v1264, 0.5
        %v1267 = vmul.f32 %v1265, 0.5
        %v1268 = vpack.c.bf16 %v1267, %v1266
        %v1270 = vunpack.c.l.b16 %v1268
        %v1271 = vunpack.c.h.b16 %v1268
        %v1272 = vpack.c.b16 %v1270, %v1270
        %v1273 = vpack.c.b16 %v1271, %v1271
        %1276 = vst [vmem:[%s244] sm:$0xf] %v1272
        %1277 = vst [vmem:[%s244 + $0x4] sm:$0xf] %v1273
        %s1278 = smul.u32 2, %s17
        %p1279 = scmp.lt.s32.totalorder %s1278, 3
        %s1280 = scalar_select %p1279, %s1278, 3
        %s1281 = smul.addr %s1280, 4
        %s1282 = scalar_lea.vmem %s5, %s1281
        // Predicated region
        $region45: #{classifier_forward.1} parent=39 // pred_check
          %p1283 = pneg %p145
        $region46: #{classifier_forward.1} parent=39 // pred_check_branch
          %1285 = sbr.rel (%p1283) target = $region48
        $region47: #{classifier_forward.1} parent=39 // pred_region
          %s1286 = smul.u32 2, %s17
        $region48: #{classifier_forward.1} parent=39 // pred_fallthru
          _
      $region40: #{classifier_forward.1} parent=5 // pred_fallthru
        _
      %p1287 = scmp.le.s32.totalorder 2, %s12
      // Predicated region
      $region49: #{classifier_forward.1} parent=5 // pred_check
        %p1288 = pneg %p1287
      $region50: #{classifier_forward.1} parent=5 // pred_check_branch
        %1290 = sbr.rel (%p1288) target = $region52
      $region51: #{classifier_forward.1} parent=5 // pred_region
        %s1291 = ssub.s32 %s12, 2
        // Predicated region
        $region53: #{classifier_forward.1} parent=51 // pred_check
          %p1292 = pneg %p151
        $region54: #{classifier_forward.1} parent=51 // pred_check_branch
          %1294 = sbr.rel (%p1292) target = $region56
        $region55: #{classifier_forward.1} parent=51 // pred_region
          %s1295 = smul.u32 2, %s18
          %p1296 = scmp.lt.s32.totalorder %s1295, 3
          %s1297 = scalar_select %p1296, %s1295, 3
          %s1298 = smul.addr %s1297, 4
          %s1299 = scalar_lea.vmem %s5, %s1298
        $region56: #{classifier_forward.1} parent=51 // pred_fallthru
          _
      $region52: #{classifier_forward.1} parent=5 // pred_fallthru
        _
    $region6: #{classifier_forward.1} parent=1 // loop_footer
      %s16 = sadd.s32 1, %s12
    $region7: #{classifier_forward.1} parent=1 // loop_footer_branch
      %11 = sbr.rel target = $region3
    $region8: #{classifier_forward.1} parent=1 // loop_exit
      _
    %1300 = vsyncpa [#allocation3], 1
    %s1301 = scalar_lea.sflag [#allocation3], 1
    %1302 = vsyncpa %s1301, 1

</llo_original>
